<compile_context>
chip_gen: v5e
topology: v5e:2x2
jax: 0.10.0
libtpu: 0.0.40
codegen_flags: <defaults>
</compile_context>

<pallas_src>
import functools

import jax
import jax.numpy as jnp
from jax import lax
from jax.experimental import pallas as pl
from jax.experimental.pallas import tpu as pltpu

EPS = 1e-5


def _ignition_kernel(ignition_threshold, sharpness,
                     latent_ref,   # (1, TT, D)  latent tile (f32 or bf16)
                     proj_ref,     # (1, 1, D)   precomputed LN(intent) @ Wi + bi
                     par_ref,      # (8, D) f32  rows: [lg, lb, g, (Sg,Sb,..), 0..]
                     out_ref):     # (1, 1, TT)
    x = latent_ref[0].astype(jnp.float32)          # (TT, D)
    proj = proj_ref[0].astype(jnp.float32)         # (1, D)
    par = par_ref[...]                             # (8, D) f32

    lg, lb = par[0:1, :], par[1:2, :]
    g = par[2:3, :]                                # eg * we          (1, D)
    sg = par[3:4, 0:1]                             # sum(eg*we)       (1, 1)
    sb = par[3:4, 1:2]                             # sum(eb*we) + be  (1, 1)

    d_inv = jnp.float32(1.0 / x.shape[-1])         # correct only because the
                                                   # block spans the full D.

    # ---- latent LayerNorm (single-pass stats, clamped variance, f32) ----
    s1 = jnp.sum(x, axis=-1, keepdims=True) * d_inv
    s2 = jnp.sum(x * x, axis=-1, keepdims=True) * d_inv
    var = jnp.maximum(s2 - s1 * s1, 0.0)
    xn = (x - s1) * lax.rsqrt(var + EPS) * lg + lb          # (TT, D)

    # ---- alignment with pre-projected intent, sin modulation, pressure ----
    alignment = jnp.sum(xn * proj, axis=-1, keepdims=True)  # (TT, 1)
    pressure = jax.nn.sigmoid(
        (jnp.sin(alignment) - ignition_threshold) * sharpness)

    # ---- folded energy projector: LN(xn) @ we + be, without materializing en
    m1 = jnp.sum(xn, axis=-1, keepdims=True) * d_inv
    m2 = jnp.sum(xn * xn, axis=-1, keepdims=True) * d_inv
    var_e = jnp.maximum(m2 - m1 * m1, 0.0)
    dot_g = jnp.sum(xn * g, axis=-1, keepdims=True)         # (TT, 1)
    conductance = jax.nn.sigmoid(
        lax.rsqrt(var_e + EPS) * (dot_g - m1 * sg) + sb)    # (TT, 1)

    ign = pressure * conductance                            # (TT, 1)
    # sublane -> lane relayout (XLU has slack here) for a lane-dense store.
    out_ref[0] = jnp.transpose(ign, (1, 0)).astype(out_ref.dtype)   # (1, TT)


def _vmem_capacity_bytes():
    try:
        info = pltpu.get_tpu_info()
        cap = getattr(info, "vmem_capacity_bytes", None)
        if cap:
            return int(cap)
    except Exception:
        pass
    return 64 << 20   # conservative (v7x) fallback


def _choose_row_tile(B, T, D, itemsize, vmem_cap):
    """Rows per latent tile (generation-aware).

    Budget counts the double-buffered input tile plus ~3 f32 (rows, D)
    intermediates (xn + reduction temporaries) that live in internal scratch.
    When tiling, rows is a multiple of 128 so the lane-dense output block is
    written with unmasked full-lane stores.
    """
    per_row = D * (2 * itemsize + 3 * 4)
    budget = max(1 << 20, int(0.6 * vmem_cap) - (6 << 20))
    rows = max(8, budget // per_row)

    # Megacore guard (v7x): keep >= ~4 grid steps when B is small and T is
    # large enough that splitting is worthwhile. No effect on v5e/v6e.
    if T >= 256 and B * pl.cdiv(T, rows) < 4:
        t_tiles = pl.cdiv(4, B)
        rows = min(rows, pl.cdiv(T, t_tiles))

    if rows >= T:
        return T
    rows = max(128, (rows // 128) * 128)
    return min(rows, T)


def _vmem_limit_bytes(TT, D, itemsize, vmem_cap):
    lane_t = ((TT + 127) // 128) * 128
    need = (2 * TT * D * itemsize        # latent tile, double-buffered
            + 3 * TT * D * 4             # xn + f32 reduction temporaries
            + 4 * 8 * D * 4              # packed params + proj (padded, dbl)
            + 2 * 8 * lane_t * 4         # output block (sublane-padded), dbl
            + (6 << 20))                 # headroom / misc scratch
    return int(min(max(need, 16 << 20), int(0.9 * vmem_cap)))


def resonant_ignition(latent, intent, params,
                      ignition_threshold=0.27, sharpness=25.0):
    """latent: [B, T, D], intent: [B, D] -> ignition [B, T, 1] f32.

    `latent` may be bf16 (halves HBM traffic on v5e); statistics are f32.
    Requires D >= 2 (two packed scalars share one parameter row).
    """
    B, T, D = latent.shape

    # ---- hoisted to XLA: intent LayerNorm + projection as one batched matmul
    it = intent.astype(jnp.float32)
    mu = jnp.mean(it, axis=-1, keepdims=True)
    var = jnp.mean(jnp.square(it - mu), axis=-1, keepdims=True)
    itn = (it - mu) * lax.rsqrt(var + EPS) * params["ig"] + params["ib"]
    proj = (itn @ params["wi"] + params["bi"]).astype(jnp.float32)   # (B, D)
    proj = proj.reshape(B, 1, D)

    # ---- hoisted algebra for the energy projector fold ----
    g = (params["eg"] * params["we"]).astype(jnp.float32)            # (1, D)
    sg = jnp.sum(g, axis=-1, keepdims=True)                          # (1, 1)
    sb = (jnp.sum(params["eb"] * params["we"], axis=-1, keepdims=True)
          + jnp.reshape(params["be"], (1, 1)))                       # (1, 1)
    scal_row = jnp.concatenate(
        [sg, sb, jnp.zeros((1, D - 2), jnp.float32)], axis=-1)       # (1, D)

    packed = jnp.concatenate([
        params["lg"].astype(jnp.float32),
        params["lb"].astype(jnp.float32),
        g,
        scal_row,
        jnp.zeros((4, D), jnp.float32),
    ], axis=0)                                                       # (8, D)

    itemsize = jnp.dtype(latent.dtype).itemsize
    vmem_cap = _vmem_capacity_bytes()
    TT = _choose_row_tile(B, T, D, itemsize, vmem_cap)
    grid = (B, pl.cdiv(T, TT))
    vmem_limit = _vmem_limit_bytes(TT, D, itemsize, vmem_cap)

    kernel = functools.partial(
        _ignition_kernel, float(ignition_threshold), float(sharpness))

    out = pl.pallas_call(
        kernel,
        out_shape=jax.ShapeDtypeStruct((B, 1, T), jnp.float32),
        grid_spec=pltpu.PrefetchScalarGridSpec(
            num_scalar_prefetch=0,
            grid=grid,
            in_specs=[
                pl.BlockSpec((1, TT, D), lambda b, t: (b, t, 0)),  # latent tile
                pl.BlockSpec((1, 1, D), lambda b, t: (b, 0, 0)),   # proj (resident over t)
                pl.BlockSpec((8, D), lambda b, t: (0, 0)),         # packed params (resident)
            ],
            out_specs=pl.BlockSpec((1, 1, TT), lambda b, t: (b, 0, t)),
        ),
        compiler_params=pltpu.CompilerParams(
            dimension_semantics=("parallel", "parallel"),
            vmem_limit_bytes=vmem_limit),
    )(latent, proj, packed)

    # (B, 1, T) -> (B, T, 1): layout-preserving reshape in the wrapper.
    return out.reshape(B, T, 1)


def init_params(key, D):
    """Deterministic synthetic parameters (shapes match nn.Module __init__)."""
    k1, k2, k3, k4 = jax.random.split(key, 4)
    scale = 1.0 / jnp.sqrt(D)
    return {
        # LayerNorms init: gamma=1, beta=0
        "lg": jnp.ones((1, D), jnp.float32), "lb": jnp.zeros((1, D), jnp.float32),
        "ig": jnp.ones((1, D), jnp.float32), "ib": jnp.zeros((1, D), jnp.float32),
        # intent_proj: Linear(D, D), weight stored pre-transposed as [in, out]
        "wi": jax.random.uniform(k1, (D, D), jnp.float32, -scale, scale),
        "bi": jax.random.uniform(k2, (1, D), jnp.float32, -scale, scale),
        # energy_projector: LayerNorm(D) + Linear(D, 1)
        "eg": jnp.ones((1, D), jnp.float32), "eb": jnp.zeros((1, D), jnp.float32),
        "we": jax.random.uniform(k3, (1, D), jnp.float32, -scale, scale),
        "be": jax.random.uniform(k4, (1, 1), jnp.float32, -scale, scale),
    }


def _reference(latent, intent, params, ignition_threshold=0.27, sharpness=25.0):
    """Pure-JAX reference matching the PyTorch forward."""
    def ln(x, g, b):
        mu = jnp.mean(x, axis=-1, keepdims=True)
        v = jnp.mean(jnp.square(x - mu), axis=-1, keepdims=True)
        return (x - mu) * lax.rsqrt(v + EPS) * g + b

    xn = ln(latent, params["lg"], params["lb"])
    itn = ln(intent, params["ig"], params["ib"])
    proj = itn @ params["wi"] + params["bi"]                       # (B, D)
    alignment = jnp.sum(xn * proj[:, None, :], axis=-1, keepdims=True)
    pressure = jax.nn.sigmoid((jnp.sin(alignment) - ignition_threshold) * sharpness)
    en = ln(xn, params["eg"], params["eb"])
    conductance = jax.nn.sigmoid(
        jnp.sum(en * params["we"], axis=-1, keepdims=True) + params["be"])
    return pressure * conductance


if __name__ == "__main__":
    B, T, D = 2, 8, 32
    key = jax.random.PRNGKey(0)
    k_lat, k_int, k_par = jax.random.split(key, 3)

    latent = jax.random.normal(k_lat, (B, T, D), jnp.float32)
    intent = jax.random.normal(k_int, (B, D), jnp.float32)
    params = init_params(k_par, D)

    out = resonant_ignition(latent, intent, params)
    jax.block_until_ready(out)

    assert out.shape == (B, T, 1) and out.dtype == jnp.float32
    assert bool(jnp.all(jnp.isfinite(out)))

    ref = _reference(latent, intent, params)
    max_err = float(jnp.max(jnp.abs(out - ref)))
    assert max_err < 5e-4, f"max abs err vs reference: {max_err}"

    print("KERNEL_OK")
</pallas_src>

<mosaic_0001>
module attributes {stable_mosaic.version = 11 : i64} {
  func.func @_ignition_kernel(%arg0: i32, %arg1: i32, %arg2: memref<1x8x32xf32, #tpu.memory_space<vmem>>, %arg3: memref<1x1x32xf32, #tpu.memory_space<vmem>>, %arg4: memref<8x32xf32, #tpu.memory_space<vmem>>, %arg5: memref<1x1x8xf32, #tpu.memory_space<vmem>>) attributes {dimension_semantics = [#tpu.dimension_semantics<parallel>, #tpu.dimension_semantics<parallel>], iteration_bounds = array<i64: 2, 1>, scalar_prefetch = 0 : i64, scratch_operands = 0 : i64, tpu.core_type = #tpu.core_type<tc>, window_params = [{transform_indices = @transform_0, window_bounds = array<i64: 1, 8, 32>}, {transform_indices = @transform_1, window_bounds = array<i64: 1, 1, 32>}, {pipeline_mode = #tpu.pipeline_mode<synchronous>, transform_indices = @transform_2, window_bounds = array<i64: 8, 32>}, {transform_indices = @transform_3, window_bounds = array<i64: 1, 1, 8>}]} {
    %c0 = arith.constant 0 : index
    %c0_0 = arith.constant 0 : index
    %c0_1 = arith.constant 0 : index
    %0 = vector.load %arg2[%c0, %c0_0, %c0_1] : memref<1x8x32xf32, #tpu.memory_space<vmem>>, vector<1x8x32xf32>
    %1 = vector.shape_cast %0 : vector<1x8x32xf32> to vector<8x32xf32>
    %c0_2 = arith.constant 0 : index
    %c0_3 = arith.constant 0 : index
    %c0_4 = arith.constant 0 : index
    %2 = vector.load %arg3[%c0_2, %c0_3, %c0_4] : memref<1x1x32xf32, #tpu.memory_space<vmem>>, vector<1x1x32xf32>
    %3 = vector.shape_cast %2 : vector<1x1x32xf32> to vector<1x32xf32>
    %c0_5 = arith.constant 0 : index
    %c0_6 = arith.constant 0 : index
    %4 = vector.load %arg4[%c0_5, %c0_6] : memref<8x32xf32, #tpu.memory_space<vmem>>, vector<8x32xf32>
    %5 = vector.extract_strided_slice %4 {offsets = [0, 0], sizes = [1, 32], strides = [1, 1]} : vector<8x32xf32> to vector<1x32xf32>
    %6 = vector.extract_strided_slice %4 {offsets = [1, 0], sizes = [1, 32], strides = [1, 1]} : vector<8x32xf32> to vector<1x32xf32>
    %7 = vector.extract_strided_slice %4 {offsets = [2, 0], sizes = [1, 32], strides = [1, 1]} : vector<8x32xf32> to vector<1x32xf32>
    %8 = vector.extract_strided_slice %4 {offsets = [3, 0], sizes = [1, 1], strides = [1, 1]} : vector<8x32xf32> to vector<1x1xf32>
    %9 = vector.extract_strided_slice %4 {offsets = [3, 1], sizes = [1, 1], strides = [1, 1]} : vector<8x32xf32> to vector<1x1xf32>
    %cst = arith.constant dense<0.000000e+00> : vector<8xf32>
    %10 = vector.multi_reduction <add>, %1, %cst [1] : vector<8x32xf32> to vector<8xf32>
    %11 = vector.shape_cast %10 : vector<8xf32> to vector<8x1xf32>
    %cst_7 = arith.constant 3.125000e-02 : f32
    %12 = vector.broadcast %cst_7 : f32 to vector<8x1xf32>
    %13 = arith.mulf %11, %12 : vector<8x1xf32>
    %14 = arith.mulf %1, %1 : vector<8x32xf32>
    %cst_8 = arith.constant dense<0.000000e+00> : vector<8xf32>
    %15 = vector.multi_reduction <add>, %14, %cst_8 [1] : vector<8x32xf32> to vector<8xf32>
    %16 = vector.shape_cast %15 : vector<8xf32> to vector<8x1xf32>
    %cst_9 = arith.constant 3.125000e-02 : f32
    %17 = vector.broadcast %cst_9 : f32 to vector<8x1xf32>
    %18 = arith.mulf %16, %17 : vector<8x1xf32>
    %19 = arith.mulf %13, %13 : vector<8x1xf32>
    %20 = arith.subf %18, %19 : vector<8x1xf32>
    %cst_10 = arith.constant 0.000000e+00 : f32
    %21 = vector.broadcast %cst_10 : f32 to vector<8x1xf32>
    %22 = arith.maximumf %20, %21 : vector<8x1xf32>
    %23 = vector.broadcast %13 : vector<8x1xf32> to vector<8x32xf32>
    %24 = arith.subf %1, %23 : vector<8x32xf32>
    %cst_11 = arith.constant 9.99999974E-6 : f32
    %25 = vector.broadcast %cst_11 : f32 to vector<8x1xf32>
    %26 = arith.addf %22, %25 : vector<8x1xf32>
    %27 = math.rsqrt %26 : vector<8x1xf32>
    %28 = vector.broadcast %27 : vector<8x1xf32> to vector<8x32xf32>
    %29 = arith.mulf %24, %28 : vector<8x32xf32>
    %30 = vector.broadcast %5 : vector<1x32xf32> to vector<8x32xf32>
    %31 = arith.mulf %29, %30 : vector<8x32xf32>
    %32 = vector.broadcast %6 : vector<1x32xf32> to vector<8x32xf32>
    %33 = arith.addf %31, %32 : vector<8x32xf32>
    %34 = vector.broadcast %3 : vector<1x32xf32> to vector<8x32xf32>
    %35 = arith.mulf %33, %34 : vector<8x32xf32>
    %cst_12 = arith.constant dense<0.000000e+00> : vector<8xf32>
    %36 = vector.multi_reduction <add>, %35, %cst_12 [1] : vector<8x32xf32> to vector<8xf32>
    %37 = vector.shape_cast %36 : vector<8xf32> to vector<8x1xf32>
    %38 = math.sin %37 : vector<8x1xf32>
    %cst_13 = arith.constant 2.700000e-01 : f32
    %39 = vector.broadcast %cst_13 : f32 to vector<8x1xf32>
    %40 = arith.subf %38, %39 : vector<8x1xf32>
    %cst_14 = arith.constant 2.500000e+01 : f32
    %41 = vector.broadcast %cst_14 : f32 to vector<8x1xf32>
    %42 = arith.mulf %40, %41 : vector<8x1xf32>
    %43 = arith.negf %42 : vector<8x1xf32>
    %44 = math.exp %43 : vector<8x1xf32>
    %cst_15 = arith.constant 1.000000e+00 : f32
    %45 = vector.broadcast %cst_15 : f32 to vector<8x1xf32>
    %46 = arith.addf %45, %44 : vector<8x1xf32>
    %47 = arith.divf %45, %46 : vector<8x1xf32>
    %cst_16 = arith.constant dense<0.000000e+00> : vector<8xf32>
    %48 = vector.multi_reduction <add>, %33, %cst_16 [1] : vector<8x32xf32> to vector<8xf32>
    %49 = vector.shape_cast %48 : vector<8xf32> to vector<8x1xf32>
    %cst_17 = arith.constant 3.125000e-02 : f32
    %50 = vector.broadcast %cst_17 : f32 to vector<8x1xf32>
    %51 = arith.mulf %49, %50 : vector<8x1xf32>
    %52 = arith.mulf %33, %33 : vector<8x32xf32>
    %cst_18 = arith.constant dense<0.000000e+00> : vector<8xf32>
    %53 = vector.multi_reduction <add>, %52, %cst_18 [1] : vector<8x32xf32> to vector<8xf32>
    %54 = vector.shape_cast %53 : vector<8xf32> to vector<8x1xf32>
    %cst_19 = arith.constant 3.125000e-02 : f32
    %55 = vector.broadcast %cst_19 : f32 to vector<8x1xf32>
    %56 = arith.mulf %54, %55 : vector<8x1xf32>
    %57 = arith.mulf %51, %51 : vector<8x1xf32>
    %58 = arith.subf %56, %57 : vector<8x1xf32>
    %cst_20 = arith.constant 0.000000e+00 : f32
    %59 = vector.broadcast %cst_20 : f32 to vector<8x1xf32>
    %60 = arith.maximumf %58, %59 : vector<8x1xf32>
    %61 = vector.broadcast %7 : vector<1x32xf32> to vector<8x32xf32>
    %62 = arith.mulf %33, %61 : vector<8x32xf32>
    %cst_21 = arith.constant dense<0.000000e+00> : vector<8xf32>
    %63 = vector.multi_reduction <add>, %62, %cst_21 [1] : vector<8x32xf32> to vector<8xf32>
    %64 = vector.shape_cast %63 : vector<8xf32> to vector<8x1xf32>
    %cst_22 = arith.constant 9.99999974E-6 : f32
    %65 = vector.broadcast %cst_22 : f32 to vector<8x1xf32>
    %66 = arith.addf %60, %65 : vector<8x1xf32>
    %67 = math.rsqrt %66 : vector<8x1xf32>
    %68 = vector.broadcast %8 : vector<1x1xf32> to vector<8x1xf32>
    %69 = arith.mulf %51, %68 : vector<8x1xf32>
    %70 = arith.subf %64, %69 : vector<8x1xf32>
    %71 = arith.mulf %67, %70 : vector<8x1xf32>
    %72 = vector.broadcast %9 : vector<1x1xf32> to vector<8x1xf32>
    %73 = arith.addf %71, %72 : vector<8x1xf32>
    %74 = arith.negf %73 : vector<8x1xf32>
    %75 = math.exp %74 : vector<8x1xf32>
    %cst_23 = arith.constant 1.000000e+00 : f32
    %76 = vector.broadcast %cst_23 : f32 to vector<8x1xf32>
    %77 = arith.addf %76, %75 : vector<8x1xf32>
    %78 = arith.divf %76, %77 : vector<8x1xf32>
    %79 = arith.mulf %47, %78 : vector<8x1xf32>
    %80 = tpu.transpose %79, [1, 0] : vector<8x1xf32> -> vector<1x8xf32>
    %c0_24 = arith.constant 0 : index
    %c0_25 = arith.constant 0 : index
    %c0_26 = arith.constant 0 : index
    %81 = vector.load %arg5[%c0_24, %c0_25, %c0_26] : memref<1x1x8xf32, #tpu.memory_space<vmem>>, vector<1x1x8xf32>
    %82 = vector.shape_cast %81 : vector<1x1x8xf32> to vector<1x8xf32>
    %83 = vector.shape_cast %80 : vector<1x8xf32> to vector<1x1x8xf32>
    tpu.vector_store %arg5[%c0_24, %c0_25, %c0_26], %83 {strides = array<i32>} : memref<1x1x8xf32, #tpu.memory_space<vmem>>, vector<1x1x8xf32>,
    return
  }
  func.func @transform_0(%arg0: i32, %arg1: i32) -> (i32, i32, i32) {
    %c0_i32 = arith.constant 0 : i32
    %c0_i32_0 = arith.constant 0 : i32
    return %arg0, %arg1, %c0_i32 : i32, i32, i32
  }
  func.func @transform_1(%arg0: i32, %arg1: i32) -> (i32, i32, i32) {
    %c0_i32 = arith.constant 0 : i32
    %c0_i32_0 = arith.constant 0 : i32
    %c0_i32_1 = arith.constant 0 : i32
    return %arg0, %c0_i32, %c0_i32_0 : i32, i32, i32
  }
  func.func @transform_2(%arg0: i32, %arg1: i32) -> (i32, i32) {
    %c0_i32 = arith.constant 0 : i32
    %c0_i32_0 = arith.constant 0 : i32
    %c0_i32_1 = arith.constant 0 : i32
    return %c0_i32, %c0_i32_0 : i32, i32
  }
  func.func @transform_3(%arg0: i32, %arg1: i32) -> (i32, i32, i32) {
    %c0_i32 = arith.constant 0 : i32
    %c0_i32_0 = arith.constant 0 : i32
    return %arg0, %c0_i32, %arg1 : i32, i32, i32
  }
}

</mosaic_0001>

<llo_original>
// kernel: tpu_custom_call.1
$region0: #{tpu_custom_call.1}
  #allocation0 [shape = 'u32[]', space=smem, size = 0x4, offset = 0x4, fixed_abs, tag = 'smem constant byte address 0x4 - core index']
  #allocation1 [shape = 'u32[72,128]{1,0:T(1,128)}', space=vmem, size = 0x9000, scoped, tag = 'internal scratch']
  %s0 = inlined_call_operand.hbm [shape: f32[2,8,32], index: 0, kind: input, shape index: {}]
  %s1 = inlined_call_operand.hbm [shape: f32[2,1,32], index: 1, kind: input, shape index: {}]
  %s2 = inlined_call_operand.hbm [shape: f32[8,32], index: 2, kind: input, shape index: {}]
  %s3 = inlined_call_operand.hbm [shape: f32[2,1,8], index: 3, kind: output, shape index: {}]
  %s4 = sld [smem:[#allocation0]]
  $region57: #{tpu_custom_call.1} parent=0
    _
  %s6 = ssub.s32 1, %s4
  %s7 = scalar_select 0, %s6, %s4
  $region1: #{tpu_custom_call.1} parent=0
    #allocation2 [shape = 'u8[8192]{0}', space=vmem, size = 0x2000, scoped, tag = 'input window, operand 0']
    #allocation3 [shape = 's32[2]{0}', space=sflag, size = 0x8, scoped, tag = 'scoped memory for tpu_custom_call.1']
    #allocation4 [shape = 's32[2]{0}', space=sflag, size = 0x8, scoped, tag = 'scoped memory for tpu_custom_call.1']
    #allocation5 [shape = 'u8[1024]{0}', space=vmem, size = 0x400, scoped, tag = 'input window, operand 1']
    #allocation6 [shape = 's32[2]{0}', space=sflag, size = 0x8, scoped, tag = 'scoped memory for tpu_custom_call.1']
    #allocation7 [shape = 'u8[4096]{0}', space=vmem, size = 0x1000, scoped, tag = 'input window, operand 2, single buffered']
    #allocation8 [shape = 'u8[1024]{0}', space=vmem, size = 0x400, scoped, tag = 'output window, operand 0']
    %8 = vsyncpa [#allocation3], 0
    %s9 = scalar_lea.sflag [#allocation3], 1
    %10 = vsyncpa %s9, 0
    %11 = vsyncpa [#allocation6], 0
    %s12 = scalar_lea.sflag [#allocation6], 1
    %13 = vsyncpa %s12, 0
    %14 = vsyncpa [#allocation4], 0
    %s15 = scalar_lea.sflag [#allocation4], 1
    %16 = vsyncpa %s15, 0
    loop: start=0, step=1, limit=4
    $region2: #{tpu_custom_call.1} parent=1 // loop_pre_header
      _
    $region3: #{tpu_custom_call.1} parent=1 // loop_header
      %s18 = sphi 0, %s22
      %p19 = scmp.ge.s32.totalorder %s18, 4
      %s25 = sphi 0, %s37
      %s26 = sphi 0, %s33
      %s27 = sphi 0, %s25
      %s28 = sphi 0, %s26
      %s29 = sphi 0, %s27
      %s30 = sphi 0, %s28
      %s42 = sphi 0, %s44
      %s45 = sphi 0, %s42
      %s46 = sphi 0, %s45
      %s62 = sphi 0, %s46
      %s68 = sphi 0, %s70
      %s71 = sphi 0, %s68
      %s72 = sphi 0, %s71
      %s88 = sphi 0, %s72
      %s92 = sphi 0, %s92
      %s94 = sphi 0, %s92
      %s95 = sphi 0, %s94
      %s109 = sphi 0, %s95
      %s117 = sphi 0, %s119
      %s120 = sphi 0, %s117
      %s121 = sphi 0, %s120
      %s137 = sphi 0, %s121
    $region4: #{tpu_custom_call.1} parent=1 // loop_header_branch
      %21 = sbr.rel (%p19) target = $region8
    $region5: #{tpu_custom_call.1} parent=1 // loop_body
      %s23 = ssub.s32 %s18, 1
      %s24 = ssub.s32 %s18, 2
      %s31 = sadd.s32 1, %s26
      %p32 = scmp.ge.s32.totalorder %s31, 1
      %s33 = scalar_select %p32, 0, %s31
      %s34 = sadd.s32 1, %s25
      %s35 = scalar_select %p32, %s34, %s25
      %p36 = scmp.ge.s32.totalorder %s35, 2
      %s37 = scalar_select %p36, 0, %s35
      %s38 = ssub.s32 %s25, %s37
      %s39 = ssub.s32 %s26, %s33
      %s40 = sor.u32 %s38, %s39
      %p41 = scmp.eq.s32.totalorder %s40, 0
      %s43 = sadd.s32 %s42, 1
      %s44 = scalar_select %p41, %s42, %s43
      %p47 = pneg %p41
      %p48 = scmp.eq.s32.totalorder %s18, 1
      %p49 = por %p47, %p48
      %p50 = scmp.ne.s32.totalorder %s42, %s45
      %p51 = scmp.eq.s32.totalorder %s18, 0
      %p52 = por %p50, %p51
      %p53 = scmp.ne.s32.totalorder %s42, %s45
      %p54 = scmp.eq.s32.totalorder %s23, 1
      %p55 = por %p53, %p54
      %p56 = scmp.ne.s32.totalorder %s45, %s46
      %p57 = scmp.eq.s32.totalorder %s23, 0
      %p58 = por %p56, %p57
      %p59 = scmp.ne.s32.totalorder %s45, %s46
      %p60 = scmp.eq.s32.totalorder %s24, 1
      %p61 = por %p59, %p60
      %p63 = scmp.ne.s32.totalorder %s46, %s62
      %p64 = scmp.eq.s32.totalorder %s24, 0
      %p65 = por %p63, %p64
      %s66 = ssub.s32 %s25, %s37
      %p67 = scmp.eq.s32.totalorder %s66, 0
      %s69 = sadd.s32 %s68, 1
      %s70 = scalar_select %p67, %s68, %s69
      %p73 = pneg %p67
      %p74 = scmp.eq.s32.totalorder %s18, 1
      %p75 = por %p73, %p74
      %p76 = scmp.ne.s32.totalorder %s68, %s71
      %p77 = scmp.eq.s32.totalorder %s18, 0
      %p78 = por %p76, %p77
      %p79 = scmp.ne.s32.totalorder %s68, %s71
      %p80 = scmp.eq.s32.totalorder %s23, 1
      %p81 = por %p79, %p80
      %p82 = scmp.ne.s32.totalorder %s71, %s72
      %p83 = scmp.eq.s32.totalorder %s23, 0
      %p84 = por %p82, %p83
      %p85 = scmp.ne.s32.totalorder %s71, %s72
      %p86 = scmp.eq.s32.totalorder %s24, 1
      %p87 = por %p85, %p86
      %p89 = scmp.ne.s32.totalorder %s72, %s88
      %p90 = scmp.eq.s32.totalorder %s24, 0
      %p91 = por %p89, %p90
      %s93 = sadd.s32 %s92, 1
      %p96 = scmp.eq.s32.totalorder %s18, 1
      %p97 = scmp.ne.s32.totalorder %s92, %s94
      %p98 = scmp.eq.s32.totalorder %s18, 0
      %p99 = por %p97, %p98
      %p100 = scmp.ne.s32.totalorder %s92, %s94
      %p101 = scmp.eq.s32.totalorder %s23, 1
      %p102 = por %p100, %p101
      %p103 = scmp.ne.s32.totalorder %s94, %s95
      %p104 = scmp.eq.s32.totalorder %s23, 0
      %p105 = por %p103, %p104
      %p106 = scmp.ne.s32.totalorder %s94, %s95
      %p107 = scmp.eq.s32.totalorder %s24, 1
      %p108 = por %p106, %p107
      %p110 = scmp.ne.s32.totalorder %s95, %s109
      %p111 = scmp.eq.s32.totalorder %s24, 0
      %p112 = por %p110, %p111
      %s113 = ssub.s32 %s25, %s37
      %s114 = ssub.s32 %s26, %s33
      %s115 = sor.u32 %s113, %s114
      %p116 = scmp.eq.s32.totalorder %s115, 0
      %s118 = sadd.s32 %s117, 1
      %s119 = scalar_select %p116, %s117, %s118
      %p122 = pneg %p116
      %p123 = scmp.eq.s32.totalorder %s18, 1
      %p124 = por %p122, %p123
      %p125 = scmp.ne.s32.totalorder %s117, %s120
      %p126 = scmp.eq.s32.totalorder %s18, 0
      %p127 = por %p125, %p126
      %p128 = scmp.ne.s32.totalorder %s117, %s120
      %p129 = scmp.eq.s32.totalorder %s23, 1
      %p130 = por %p128, %p129
      %p131 = scmp.ne.s32.totalorder %s120, %s121
      %p132 = scmp.eq.s32.totalorder %s23, 0
      %p133 = por %p131, %p132
      %p134 = scmp.ne.s32.totalorder %s120, %s121
      %p135 = scmp.eq.s32.totalorder %s24, 1
      %p136 = por %p134, %p135
      %p138 = scmp.ne.s32.totalorder %s121, %s137
      %p139 = scmp.eq.s32.totalorder %s24, 0
      %p140 = por %p138, %p139
      %p141 = scmp.le.s32.totalorder 1, %s18
      %p142 = scmp.lt.s32.totalorder %s18, 3
      %p143 = pnand %p141, %p142
      %p144 = pneg %p143
      // Predicated region
      $region9: #{tpu_custom_call.1} parent=5 // pred_check
        _
      $region10: #{tpu_custom_call.1} parent=5 // pred_check_branch
        %146 = sbr.rel (%p143) target = $region12
      $region11: #{tpu_custom_call.1} parent=5 // pred_region
        %s147 = ssub.s32 %s18, 1
        // Predicated region
        $region13: #{tpu_custom_call.1} parent=11 // pred_check
          %p148 = pneg %p105
        $region14: #{tpu_custom_call.1} parent=11 // pred_check_branch
          %150 = sbr.rel (%p148) target = $region16
        $region15: #{tpu_custom_call.1} parent=11 // pred_region
          %152 = vsyncadd [#allocation6], 0
          %s154 = sshll.u32 %s2, 4
          %s155 = int_to_ptr.hbm [resolvable:$true] %s154
          %s156 = sshll.u32 [#allocation7], 4
          %s157 = int_to_ptr.vmem [resolvable:$true] %s156
          %159 = dma.hbm_to_vmem [thread:$0]  %s155, 128, %s157, [#allocation6]
        $region16: #{tpu_custom_call.1} parent=11 // pred_fallthru
          _
      $region12: #{tpu_custom_call.1} parent=5 // pred_fallthru
        _
      %p160 = scmp.lt.s32.totalorder %s18, 2
      // Predicated region
      $region17: #{tpu_custom_call.1} parent=5 // pred_check
        %p161 = pneg %p160
      $region18: #{tpu_custom_call.1} parent=5 // pred_check_branch
        %163 = sbr.rel (%p161) target = $region20
      $region19: #{tpu_custom_call.1} parent=5 // pred_region
        // Predicated region
        $region21: #{tpu_custom_call.1} parent=19 // pred_check
          %p164 = pneg %p52
        $region22: #{tpu_custom_call.1} parent=19 // pred_check_branch
          %166 = sbr.rel (%p164) target = $region24
        $region23: #{tpu_custom_call.1} parent=19 // pred_region
          %s167 = sand.u32 %s42, 1
          %s168 = scalar_lea.sflag [#allocation3], %s167
          %s169 = sand.u32 %s42, 1
          %s170 = smul.addr %s169, 8
          %s171 = scalar_lea.vmem [#allocation2], %s170
          %173 = vsyncadd %s168, 0
          %s174 = sadd.s32 %s26, %s25
          %s175 = smul.addr %s174, 8
          %s176 = scalar_lea.hbm %s0, %s175
          %s178 = sshll.u32 %s176, 4
          %s179 = int_to_ptr.hbm [resolvable:$true] %s178
          %s180 = sshll.u32 %s171, 4
          %s181 = int_to_ptr.vmem [resolvable:$true] %s180
          %183 = dma.hbm_to_vmem [thread:$0]  %s179, 128, %s181, %s168
        $region24: #{tpu_custom_call.1} parent=19 // pred_fallthru
          _
        // Predicated region
        $region25: #{tpu_custom_call.1} parent=19 // pred_check
          %p184 = pneg %p78
        $region26: #{tpu_custom_call.1} parent=19 // pred_check_branch
          %186 = sbr.rel (%p184) target = $region28
        $region27: #{tpu_custom_call.1} parent=19 // pred_region
          %s187 = sand.u32 %s18, 1
          %s188 = scalar_lea.sflag [#allocation6], %s187
          %s189 = sand.u32 %s68, 1
          %s190 = scalar_lea.vmem [#allocation5], %s189
          %192 = vsyncadd %s188, 0
          %s193 = scalar_lea.hbm %s1, %s25
          %s195 = sshll.u32 %s193, 4
          %s196 = int_to_ptr.hbm [resolvable:$true] %s195
          %s197 = sshll.u32 %s190, 4
          %s198 = int_to_ptr.vmem [resolvable:$true] %s197
          %200 = dma.hbm_to_vmem [thread:$0]  %s196, 16, %s198, %s188
        $region28: #{tpu_custom_call.1} parent=19 // pred_fallthru
          _
      $region20: #{tpu_custom_call.1} parent=5 // pred_fallthru
        _
      %p201 = scmp.le.s32.totalorder 1, %s18
      %p202 = scmp.lt.s32.totalorder %s18, 3
      %p203 = pnand %p201, %p202
      %p204 = pneg %p203
      // Predicated region
      $region29: #{tpu_custom_call.1} parent=5 // pred_check
        _
      $region30: #{tpu_custom_call.1} parent=5 // pred_check_branch
        %206 = sbr.rel (%p203) target = $region32
      $region31: #{tpu_custom_call.1} parent=5 // pred_region
        %s207 = ssub.s32 %s18, 1
        %s208 = sand.u32 %s45, 1
        %s209 = scalar_lea.sflag [#allocation3], %s208
        %s210 = sand.u32 %s45, 1
        %s211 = smul.addr %s210, 8
        %s212 = scalar_lea.vmem [#allocation2], %s211
        // Predicated region
        $region33: #{tpu_custom_call.1} parent=31 // pred_check
          %p213 = pneg %p58
        $region34: #{tpu_custom_call.1} parent=31 // pred_check_branch
          %215 = sbr.rel (%p213) target = $region36
        $region35: #{tpu_custom_call.1} parent=31 // pred_region
          %217 = dma.done %s209, 128
        $region36: #{tpu_custom_call.1} parent=31 // pred_fallthru
          _
        %s218 = sand.u32 %s23, 1
        %s219 = scalar_lea.sflag [#allocation6], %s218
        %s220 = sand.u32 %s71, 1
        %s221 = scalar_lea.vmem [#allocation5], %s220
        // Predicated region
        $region37: #{tpu_custom_call.1} parent=31 // pred_check
          %p222 = pneg %p84
        $region38: #{tpu_custom_call.1} parent=31 // pred_check_branch
          %224 = sbr.rel (%p222) target = $region40
        $region39: #{tpu_custom_call.1} parent=31 // pred_region
          %226 = dma.done %s219, 16
        $region40: #{tpu_custom_call.1} parent=31 // pred_fallthru
          _
        // Predicated region
        $region41: #{tpu_custom_call.1} parent=31 // pred_check
          %p227 = pneg %p105
        $region42: #{tpu_custom_call.1} parent=31 // pred_check_branch
          %229 = sbr.rel (%p227) target = $region44
        $region43: #{tpu_custom_call.1} parent=31 // pred_region
          %231 = dma.done [#allocation6], 128
        $region44: #{tpu_custom_call.1} parent=31 // pred_fallthru
          _
        %s232 = sand.u32 %s45, 1
        %s233 = scalar_lea.sflag [#allocation3], %s232
        %s234 = sand.u32 %s45, 1
        %s235 = smul.addr %s234, 8
        %s236 = scalar_lea.vmem [#allocation2], %s235
        %p237 = pneg %p58
        %p238 = pneg %p55
        %s239 = sand.u32 %s23, 1
        %s240 = scalar_lea.sflag [#allocation6], %s239
        %s241 = sand.u32 %s71, 1
        %s242 = scalar_lea.vmem [#allocation5], %s241
        %p243 = pneg %p84
        %p244 = pneg %p81
        %p245 = pneg %p105
        %p246 = pneg %p102
        %p247 = pneg %p133
        %p248 = pneg %p130
        %s249 = sand.u32 %s120, 1
        %s250 = scalar_lea.sflag [#allocation4], %s249
        %s251 = sand.u32 %s120, 1
        %s252 = scalar_lea.vmem [#allocation8], %s251
        %v253 = vld [vmem:[%s212] sm:$0xff]
        %v254 = vld [vmem:[%s221] sm:$0x1]
        %v255 = vld [vmem:[#allocation7] sm:$0xff]
        %vm256 = vcmask 261120
        %v257 = vsel %vm256, %v253, 0.0
        %258 = vadd.xlane.f32.xlu0 %v257
        %v259 = vpop.xlane.xlu0 %258
        %v260 = vmul.f32 %v259, 0.03125
        %v261 = vmul.f32 %v253, %v253
        %v262 = vsel %vm256, %v261, 0.0
        %263 = vadd.xlane.f32.xlu0 %v262
        %v264 = vpop.xlane.xlu0 %263
        %v265 = vmul.f32 %v264, 0.03125
        %v266 = vmul.f32 %v260, %v260
        %v267 = vsub.f32 %v265, %v266
        %v268 = vmax.f32 %v267, 0.0
        %v269 = vsub.f32 %v253, %v260
        %v270 = vadd.f32 %v268, 1e-05
        %v271 = vrsqrt.pop %v270
        %v272 = vmul.f32 %v271, %v270
        %v273 = vmul.f32 %v272, %v271
        %v274 = vmul.f32 0.5, %v273
        %v275 = vsub.f32 1.5, %v274
        %v276 = vmul.f32 %v271, %v275
        %vm277 = vweird.f32 %v270
        %vm278 = vweird.f32 %v271
        %vm279 = vmor %vm277, %vm278
        %v280 = vsel %vm279, %v271, %v276
        %v281 = vmul.f32 %v269, %v280
        %v282 = vperm.slane %v255, 0
        %v283 = vmul.f32 %v281, %v282
        %v284 = vperm.slane %v255, 1
        %v285 = vadd.f32 %v283, %v284
        %v287 = vperm.slane %v254, 0
        %v289 = vmul.f32 %v285, %v287
        %v290 = vsel %vm256, %v289, 0.0
        %291 = vadd.xlane.f32.xlu0 %v290
        %v292 = vpop.xlane.xlu0 %291
        %v293 = vand.u32 2147483647, %v292
        %vm294 = vcmp.le.f32.partialorder %v293, 0.7853982
        %vm295 = vcmp.lt.s32.totalorder %v292, 0
        %v296 = vand.u32 %v292, 2139095040
        %v297 = vshrl.u32 %v296, 23
        %v298 = vsub.s32 %v297, 127
        %v299 = vand.u32 2147483647, %v292
        %v300 = vand.u32 %v299, 8388607
        %v301 = vor.u32 %v300, 8388608
        %v302 = vsub.s32 0, %v301
        %v303 = vadd.s32 %v298, 1
        %vm304 = vcmp.gt.s32.totalorder %v303, 0
        %v305 = vsel %vm304, %v303, 0
        %v306 = vshrl.u32 %v305, 5
        %v307 = vand.u32 %v305, 31
        %v308 = vsub.s32 32, %v307
        %v309 = vshrl.u32 683565275, %v308
        %v310 = vshll.u32 683565275, %v307
        %v311 = vshrl.u32 2475754826, %v308
        %v312 = vor.u32 %v310, %v311
        %v313 = vshll.u32 2475754826, %v307
        %v314 = vshrl.u32 2131351028, %v308
        %v315 = vor.u32 %v313, %v314
        %v316 = vshll.u32 2131351028, %v307
        %v317 = vshrl.u32 2102212464, %v308
        %v318 = vor.u32 %v316, %v317
        %v319 = vshll.u32 2102212464, %v307
        %v320 = vshrl.u32 920167782, %v308
        %v321 = vor.u32 %v319, %v320
        %v322 = vshll.u32 920167782, %v307
        %v323 = vshrl.u32 1326507024, %v308
        %v324 = vor.u32 %v322, %v323
        %vm325 = vcmp.lt.s32.totalorder %v306, 1
        %vm326 = vcmp.lt.s32.totalorder %v306, 2
        %vm327 = vcmp.lt.s32.totalorder %v306, 3
        %vm328 = vcmp.lt.s32.totalorder %v306, 4
        %v329 = vsel %vm325, %v309, %v312
        %v330 = vsel %vm328, %v318, 2102212464
        %v331 = vsel %vm327, %v315, %v330
        %v332 = vsel %vm326, %v329, %v331
        %v333 = vsel %vm325, %v312, %v315
        %v334 = vsel %vm328, %v321, 920167782
        %v335 = vsel %vm327, %v318, %v334
        %v336 = vsel %vm326, %v333, %v335
        %v337 = vsel %vm325, %v315, %v318
        %v338 = vsel %vm328, %v324, 1326507024
        %v339 = vsel %vm327, %v321, %v338
        %v340 = vsel %vm326, %v337, %v339
        %v341 = vshll.u32 %v301, 8
        %v342 = vand.u32 %v341, 65535
        %v343 = vshrl.u32 %v341, 16
        %v344 = vand.u32 %v340, 65535
        %v345 = vshrl.u32 %v340, 16
        %v346 = vmul.u32 %v342, %v344
        %v347 = vmul.u32 %v342, %v345
        %v348 = vmul.u32 %v343, %v344
        %v349 = vmul.u32 %v343, %v345
        %v350 = vshll.u32 %v347, 16
        %v351 = vshrl.u32 %v347, 16
        %v352 = vshll.u32 %v348, 16
        %v353 = vshrl.u32 %v348, 16
        %vm354 = vc.u32 %v346, %v350
        %v355 = vsel %vm354, 1, 0
        %v356 = vadd.s32 %v346, %v350
        %v357 = vadd.s32 %v349, %v355
        %vm358 = vc.u32 %v356, %v352
        %v359 = vsel %vm358, 1, 0
        %v360 = vadd.s32 %v356, %v352
        %v361 = vadd.s32 %v357, %v359
        %v362 = vadd.s32 %v361, %v351
        %v363 = vadd.s32 %v362, %v353
        %v364 = vand.u32 %v341, 65535
        %v365 = vshrl.u32 %v341, 16
        %v366 = vand.u32 %v336, 65535
        %v367 = vshrl.u32 %v336, 16
        %v368 = vmul.u32 %v364, %v366
        %v369 = vmul.u32 %v364, %v367
        %v370 = vmul.u32 %v365, %v366
        %v371 = vmul.u32 %v365, %v367
        %v372 = vshll.u32 %v369, 16
        %v373 = vshrl.u32 %v369, 16
        %v374 = vshll.u32 %v370, 16
        %v375 = vshrl.u32 %v370, 16
        %vm376 = vc.u32 %v368, %v372
        %v377 = vsel %vm376, 1, 0
        %v378 = vadd.s32 %v368, %v372
        %v379 = vadd.s32 %v371, %v377
        %vm380 = vc.u32 %v378, %v374
        %v381 = vsel %vm380, 1, 0
        %v382 = vadd.s32 %v378, %v374
        %v383 = vadd.s32 %v379, %v381
        %v384 = vadd.s32 %v383, %v373
        %v385 = vadd.s32 %v384, %v375
        %v386 = vmul.u32 %v341, %v332
        %v387 = vadd.s32 %v363, %v382
        %vm388 = vc.u32 %v363, %v382
        %v389 = vadd.s32 %v385, 1
        %v390 = vsel %vm388, %v389, %v385
        %v391 = vadd.s32 %v386, %v390
        %v392 = vadd.s32 %v391, 536870912
        %v393 = vshrl.u32 %v392, 30
        %v394 = vshll.u32 %v393, 30
        %v395 = vsub.s32 %v391, %v394
        %vm396 = vcmp.lt.s32.totalorder %v395, 0
        %v397 = vsub.s32 0, %v395
        %v398 = vsel %vm396, %v397, %v395
        %v399 = vclz %v398
        %v400 = vsub.s32 %v399, 2
        %vm401 = vcmp.gt.s32.totalorder 0, %v400
        %v402 = vsel %vm401, 0, %v400
        %v403 = vsub.s32 32, %v402
        %v404 = vshll.u32 %v395, %v402
        %v405 = vshrl.u32 %v387, %v403
        %v406 = vor.u32 %v404, %v405
        %v407 = vsub.s32 4294967266, %v402
        %v408 = vadd.s32 %v407, 127
        %v409 = vshll.u32 %v408, 23
        %v410 = vor.u32 4788187, %v409
        %v411 = vand.u32 2147483647, %v410
        %v413 = vcvt.s32.f32 %v406
        %v414 = vmul.f32 %v413, %v411
        %v415 = vxor.u32 %v414, 2147483648
        %v416 = vsel %vm295, %v415, %v414
        %v417 = vsub.s32 4, %v393
        %v418 = vsel %vm295, %v417, %v393
        %v419 = vsel %vm294, %v292, %v416
        %v420 = vsel %vm294, 0, %v418
        %v421 = vmul.f32 %v419, %v419
        %v422 = vmul.f32 %v421, -0.001358992
        %v423 = vadd.f32 %v422, 0.041655596
        %v424 = vmul.f32 %v421, %v423
        %v425 = vadd.f32 %v424, -0.4999988
        %v426 = vmul.f32 %v421, %v425
        %v427 = vadd.f32 1.0, %v426
        %v428 = vmul.f32 %v419, %v419
        %v429 = vmul.f32 %v428, -0.00019511016
        %v430 = vadd.f32 %v429, 0.008332121
        %v431 = vmul.f32 %v428, %v430
        %v432 = vadd.f32 %v431, -0.16666654
        %v433 = vmul.f32 %v428, %v432
        %v434 = vadd.f32 %v433, 1.0
        %v435 = vmul.f32 %v434, %v419
        %vm436 = vweird.f32 %v292
        %v437 = vadd.s32 %v420, 3
        %v438 = vand.u32 %v437, 3
        %vm439 = vcmp.lt.s32.totalorder %v438, 2
        %vm440 = vcmp.eq.s32.totalorder %v438, 0
        %v441 = vxor.u32 %v435, 2147483648
        %v442 = vsel %vm440, %v427, %v441
        %vm443 = vcmp.eq.s32.totalorder %v438, 2
        %v444 = vxor.u32 %v427, 2147483648
        %v445 = vsel %vm443, %v444, %v435
        %v446 = vsel %vm439, %v442, %v445
        %v447 = vsel %vm436, nan, %v446
        %v448 = vsub.f32 %v447, 0.27
        %v449 = vmul.f32 %v448, 25.0
        %v450 = vxor.u32 %v449, 2147483648
        %v451 = vmul.f32 %v450, 1.442695
        %v452 = vpow.pop %v451
        %v453 = vadd.f32 %v452, 1.0
        %v454 = vrcp.pop %v453
        %v455 = vmul.f32 %v453, %v454
        %v456 = vsub.f32 1.0, %v455
        %v457 = vmul.f32 %v454, %v456
        %v458 = vadd.f32 %v454, %v457
        %vm459 = vweird.f32 %v453
        %vm460 = vweird.f32 %v454
        %vm461 = vmor %vm459, %vm460
        %v462 = vsel %vm461, %v454, %v458
        %v463 = vand.u32 2147483647, %v453
        %vm464 = vcmp.eq.f32.partialorder %v463, 8.507059e+37
        %v465 = vand.u32 %v453, 2147483648
        %v466 = vor.u32 1.1754944e-38, %v465
        %v467 = vsel %vm464, %v466, %v462
        %v468 = vmul.f32 1.0, %v467
        %v469 = vsel %vm256, %v285, 0.0
        %470 = vadd.xlane.f32.xlu0 %v469
        %v471 = vpop.xlane.xlu0 %470
        %v472 = vmul.f32 %v471, 0.03125
        %v473 = vmul.f32 %v285, %v285
        %v474 = vsel %vm256, %v473, 0.0
        %475 = vadd.xlane.f32.xlu0 %v474
        %v476 = vpop.xlane.xlu0 %475
        %v477 = vmul.f32 %v476, 0.03125
        %v478 = vmul.f32 %v472, %v472
        %v479 = vsub.f32 %v477, %v478
        %v480 = vmax.f32 %v479, 0.0
        %v481 = vperm.slane %v255, 2
        %v482 = vmul.f32 %v285, %v481
        %v483 = vsel %vm256, %v482, 0.0
        %484 = vadd.xlane.f32.xlu0 %v483
        %v485 = vpop.xlane.xlu0 %484
        %v486 = vadd.f32 %v480, 1e-05
        %v487 = vrsqrt.pop %v486
        %v488 = vmul.f32 %v487, %v486
        %v489 = vmul.f32 %v488, %v487
        %v490 = vmul.f32 0.5, %v489
        %v491 = vsub.f32 1.5, %v490
        %v492 = vmul.f32 %v487, %v491
        %vm493 = vweird.f32 %v486
        %vm494 = vweird.f32 %v487
        %vm495 = vmor %vm493, %vm494
        %v496 = vsel %vm495, %v487, %v492
        %v497 = vperm.slane %v255, 3
        %v498 = vmul.f32 %v472, %v497
        %v499 = vsub.f32 %v485, %v498
        %v500 = vmul.f32 %v496, %v499
        %502 = vrot.lane.b32.xlu0 %v497, 127
        %v503 = vpop.permute.xlu0 %502
        %v505 = vadd.f32 %v500, %v503
        %v506 = vxor.u32 %v505, 2147483648
        %v507 = vmul.f32 %v506, 1.442695
        %v508 = vpow.pop %v507
        %v509 = vadd.f32 %v508, 1.0
        %v510 = vrcp.pop %v509
        %v511 = vmul.f32 %v509, %v510
        %v512 = vsub.f32 1.0, %v511
        %v513 = vmul.f32 %v510, %v512
        %v514 = vadd.f32 %v510, %v513
        %vm515 = vweird.f32 %v509
        %vm516 = vweird.f32 %v510
        %vm517 = vmor %vm515, %vm516
        %v518 = vsel %vm517, %v510, %v514
        %v519 = vand.u32 2147483647, %v509
        %vm520 = vcmp.eq.f32.partialorder %v519, 8.507059e+37
        %v521 = vand.u32 %v509, 2147483648
        %v522 = vor.u32 1.1754944e-38, %v521
        %v523 = vsel %vm520, %v522, %v518
        %v524 = vmul.f32 1.0, %v523
        %v525 = vmul.f32 %v468, %v524
        %526 = vxpose.xlu0.b32.start [1/16] %v525, 128
        %527 = vxpose.xlu0.b32.cont [2/16] 0.0, 128
        %528 = vxpose.xlu0.b32.cont [3/16] 0.0, 128
        %529 = vxpose.xlu0.b32.cont [4/16] 0.0, 128
        %530 = vxpose.xlu0.b32.cont [5/16] 0.0, 128
        %531 = vxpose.xlu0.b32.cont [6/16] 0.0, 128
        %532 = vxpose.xlu0.b32.cont [7/16] 0.0, 128
        %533 = vxpose.xlu0.b32.cont [8/16] 0.0, 128
        %534 = vxpose.xlu0.b32.cont [9/16] 0.0, 128
        %535 = vxpose.xlu0.b32.cont [10/16] 0.0, 128
        %536 = vxpose.xlu0.b32.cont [11/16] 0.0, 128
        %537 = vxpose.xlu0.b32.cont [12/16] 0.0, 128
        %538 = vxpose.xlu0.b32.cont [13/16] 0.0, 128
        %539 = vxpose.xlu0.b32.cont [14/16] 0.0, 128
        %540 = vxpose.xlu0.b32.cont [15/16] 0.0, 128
        %541 = vxpose.xlu0.b32.end [16/16] 0.0, 128
        %v542 = vpop.trf.xlu0
        %v543 = vpop.trf.xlu0
        %v544 = vpop.trf.xlu0
        %v545 = vpop.trf.xlu0
        %v546 = vpop.trf.xlu0
        %v547 = vpop.trf.xlu0
        %v548 = vpop.trf.xlu0
        %v549 = vpop.trf.xlu0
        %v550 = vpop.trf.xlu0
        %v551 = vpop.trf.xlu0
        %v552 = vpop.trf.xlu0
        %v553 = vpop.trf.xlu0
        %v554 = vpop.trf.xlu0
        %v555 = vpop.trf.xlu0
        %v556 = vpop.trf.xlu0
        %v557 = vpop.trf.xlu0
        %vm558 = vcmask 57344
        %559 = vst.msk [vmem:[%s252] sm:$0x1] %vm558, %v542
        %s560 = sand.u32 %s120, 1
        %s561 = scalar_lea.sflag [#allocation4], %s560
        %s562 = sand.u32 %s120, 1
        %s563 = scalar_lea.vmem [#allocation8], %s562
        // Predicated region
        $region45: #{tpu_custom_call.1} parent=31 // pred_check
          %p564 = pneg %p130
        $region46: #{tpu_custom_call.1} parent=31 // pred_check_branch
          %566 = sbr.rel (%p564) target = $region48
        $region47: #{tpu_custom_call.1} parent=31 // pred_region
          %568 = vsyncadd %s561, 0
          %s569 = sadd.s32 %s28, %s27
          %s570 = scalar_lea.hbm %s3, %s569
          %s572 = sshll.u32 %s563, 4
          %s573 = int_to_ptr.vmem [resolvable:$true] %s572
          %s574 = sshll.u32 %s570, 4
          %s575 = int_to_ptr.hbm [resolvable:$true] %s574
          %577 = dma.vmem_to_hbm [thread:$0]  %s573, 16, %s575, %s561
        $region48: #{tpu_custom_call.1} parent=31 // pred_fallthru
          _
      $region32: #{tpu_custom_call.1} parent=5 // pred_fallthru
        _
      %p578 = scmp.le.s32.totalorder 2, %s18
      // Predicated region
      $region49: #{tpu_custom_call.1} parent=5 // pred_check
        %p579 = pneg %p578
      $region50: #{tpu_custom_call.1} parent=5 // pred_check_branch
        %581 = sbr.rel (%p579) target = $region52
      $region51: #{tpu_custom_call.1} parent=5 // pred_region
        %s582 = ssub.s32 %s18, 2
        // Predicated region
        $region53: #{tpu_custom_call.1} parent=51 // pred_check
          %p583 = pneg %p136
        $region54: #{tpu_custom_call.1} parent=51 // pred_check_branch
          %585 = sbr.rel (%p583) target = $region56
        $region55: #{tpu_custom_call.1} parent=51 // pred_region
          %s586 = sand.u32 %s121, 1
          %s587 = scalar_lea.sflag [#allocation4], %s586
          %s588 = sand.u32 %s121, 1
          %s589 = scalar_lea.vmem [#allocation8], %s588
          %591 = dma.done %s587, 16
        $region56: #{tpu_custom_call.1} parent=51 // pred_fallthru
          _
      $region52: #{tpu_custom_call.1} parent=5 // pred_fallthru
        _
    $region6: #{tpu_custom_call.1} parent=1 // loop_footer
      %s22 = sadd.s32 1, %s18
    $region7: #{tpu_custom_call.1} parent=1 // loop_footer_branch
      %17 = sbr.rel target = $region3
    $region8: #{tpu_custom_call.1} parent=1 // loop_exit
      _
    %592 = vsyncpa [#allocation3], 1
    %s593 = scalar_lea.sflag [#allocation3], 1
    %594 = vsyncpa %s593, 1
    %595 = vsyncpa [#allocation6], 1
    %s596 = scalar_lea.sflag [#allocation6], 1
    %597 = vsyncpa %s596, 1
    %598 = vsyncpa [#allocation4], 1
    %s599 = scalar_lea.sflag [#allocation4], 1
    %600 = vsyncpa %s599, 1

</llo_original>
